<compile_context>
chip_gen: v7x
topology: tpu7x:2x2x1
jax: 0.10.0
libtpu: 0.0.40
codegen_flags: <defaults>
</compile_context>

<pallas_src>
import jax
import jax.numpy as jnp
from jax.experimental import pallas as pl
from jax.experimental.pallas import tpu as pltpu

# Lane-dense tile: 512 lanes (multiple of 128, unmasked vst) x up to 1024
# sublanes. 1024x512 f32 = 2 MiB/tile -> ~8 MiB double-buffered in+out, safely
# under the default scoped VMEM limit on v5e/v6e (128 MiB) and v7x (64 MiB).
_TILE_COLS = 512
_MAX_TILE_ROWS = 1024

# Below one vreg-row's worth of useful work, kernel launch + DMA setup dominate;
# let XLA's fused elementwise add handle it.
_SMALL_SIZE = 8 * 128


def _round_up(x, m):
    return ((x + m - 1) // m) * m


def _add_one_kernel(x_ref, o_ref):
    # whole-tile elementwise add on the VPU
    o_ref[...] = x_ref[...] + jnp.asarray(1, dtype=o_ref.dtype)


def lzlmodule_forward(x):
    """Pallas equivalent of lzlmodule.forward: output = input + 1.

    Accepts any shape (including the 0-d scalar from the PyTorch example
    `x = torch.tensor(1.0)`). Tiny / empty inputs short-circuit to plain JAX;
    everything else is re-packed into a lane-dense slab and streamed through a
    tiled Pallas grid.
    """
    x = jnp.asarray(x)
    orig_shape = x.shape
    n = x.size
    one = jnp.asarray(1, dtype=x.dtype)

    # Empty or tiny inputs: the Pallas call would be pure overhead.
    if n == 0 or n < _SMALL_SIZE:
        return x + one

    # --- wrapper-side layout plumbing (no compute) -------------------------
    # Flatten and re-pack as a lane-dense (rows, 512) slab with tail padding.
    cols = _TILE_COLS
    rows = pl.cdiv(n, cols)
    # Tile rows: full (8-aligned) row count for small slabs, else 1024.
    if rows <= _MAX_TILE_ROWS:
        tile_rows = _round_up(rows, 8)
    else:
        tile_rows = _MAX_TILE_ROWS
    rows_padded = _round_up(rows, tile_rows)

    flat = x.reshape(-1)
    pad = rows_padded * cols - n
    if pad:
        flat = jnp.pad(flat, (0, pad))
    slab = flat.reshape(rows_padded, cols)

    # --- pipelined, tiled elementwise kernel -------------------------------
    out_slab = pl.pallas_call(
        _add_one_kernel,
        out_shape=jax.ShapeDtypeStruct((rows_padded, cols), slab.dtype),
        grid_spec=pltpu.PrefetchScalarGridSpec(
            num_scalar_prefetch=0,
            grid=(rows_padded // tile_rows,),
            in_specs=[pl.BlockSpec((tile_rows, cols), lambda i: (i, 0))],
            out_specs=pl.BlockSpec((tile_rows, cols), lambda i: (i, 0)),
        ),
        compiler_params=pltpu.CompilerParams(
            dimension_semantics=("parallel",)),
        # Output has identical shape/dtype: reuse the (temporary) slab buffer.
        input_output_aliases={0: 0},
    )(slab)

    return out_slab.reshape(-1)[:n].reshape(orig_shape)


if __name__ == "__main__":
    key = jax.random.PRNGKey(0)

    # Exact case from the PyTorch script: scalar input tensor(1.0).
    x_scalar = jnp.asarray(1.0, dtype=jnp.float32)
    out_scalar = jax.block_until_ready(lzlmodule_forward(x_scalar))
    assert out_scalar.shape == ()
    assert jnp.allclose(out_scalar, 2.0)

    # Small batched example (goes through the Pallas kernel, single tile).
    x = jax.random.normal(key, (2, 4, 16, 16), dtype=jnp.float32)
    out = jax.block_until_ready(lzlmodule_forward(x))
    assert out.shape == x.shape
    assert jnp.allclose(out, x + 1.0)

    # Slightly larger ragged example: exercises multi-tile grid + tail padding.
    k2, _ = jax.random.split(key)
    y = jax.random.normal(k2, (3, 300, 700), dtype=jnp.float32)
    out_y = jax.block_until_ready(lzlmodule_forward(y))
    assert out_y.shape == y.shape
    assert jnp.allclose(out_y, y + 1.0)

    print("KERNEL_OK")
</pallas_src>

<mosaic_0001>
module attributes {stable_mosaic.version = 11 : i64} {
  func.func @_add_one_kernel(%arg0: i32, %arg1: memref<8x512xf32, #tpu.memory_space<vmem>>, %arg2: memref<8x512xf32, #tpu.memory_space<vmem>>) attributes {dimension_semantics = [#tpu.dimension_semantics<parallel>], iteration_bounds = array<i64: 1>, scalar_prefetch = 0 : i64, scratch_operands = 0 : i64, tpu.core_type = #tpu.core_type<tc>, window_params = [{transform_indices = @transform_0, window_bounds = array<i64: 8, 512>}, {transform_indices = @transform_1, window_bounds = array<i64: 8, 512>}]} {
    %c0 = arith.constant 0 : index
    %c0_0 = arith.constant 0 : index
    %0 = vector.load %arg1[%c0, %c0_0] : memref<8x512xf32, #tpu.memory_space<vmem>>, vector<8x512xf32>
    %cst = arith.constant 1.000000e+00 : f32
    %1 = vector.broadcast %cst : f32 to vector<8x512xf32>
    %2 = arith.addf %0, %1 : vector<8x512xf32>
    %c0_1 = arith.constant 0 : index
    %c0_2 = arith.constant 0 : index
    %3 = vector.load %arg2[%c0_1, %c0_2] : memref<8x512xf32, #tpu.memory_space<vmem>>, vector<8x512xf32>
    tpu.vector_store %arg2[%c0_1, %c0_2], %2 {strides = array<i32>} : memref<8x512xf32, #tpu.memory_space<vmem>>, vector<8x512xf32>,
    return
  }
  func.func @transform_0(%arg0: i32) -> (i32, i32) {
    %c0_i32 = arith.constant 0 : i32
    %c0_i32_0 = arith.constant 0 : i32
    return %arg0, %c0_i32 : i32, i32
  }
  func.func @transform_1(%arg0: i32) -> (i32, i32) {
    %c0_i32 = arith.constant 0 : i32
    %c0_i32_0 = arith.constant 0 : i32
    return %arg0, %c0_i32 : i32, i32
  }
}

</mosaic_0001>

<llo_original>
// kernel: tpu_custom_call.1
$region0: #{tpu_custom_call.1}
  #allocation0 [shape = 'u32[]', space=smem, size = 0x4, offset = 0x4, fixed_abs, tag = 'smem constant byte address 0x4 - core index']
  #allocation1 [shape = 'u32[144,128]{1,0:T(1,128)}', space=vmem, size = 0x12000, scoped, tag = 'internal scratch']
  %s0 = inlined_call_operand.hbm [shape: f32[8,512], index: 0, kind: input, shape index: {}, may-alias: {0,1}]
  %s1 = inlined_call_operand.hbm [shape: f32[8,512], index: 1, kind: output, shape index: {}, may-alias: {0,1}]
  %s2 = sld [smem:[#allocation0]]
  $region18: #{tpu_custom_call.1} parent=0
    _
  %s4 = ssub.s32 1, %s2
  %s5 = scalar_select 0, %s4, %s2
  $region1: #{tpu_custom_call.1} parent=0
    #allocation2 [shape = 'u8[16384]{0}', space=vmem, size = 0x4000, scoped, tag = 'input window, operand 0, single buffered']
    #allocation3 [shape = 's32[1]{0}', space=sflag, size = 0x4, scoped, tag = 'scoped memory for tpu_custom_call.1']
    #allocation4 [shape = 's32[1]{0}', space=sflag, size = 0x4, scoped, tag = 'scoped memory for tpu_custom_call.1']
    #allocation5 [shape = 'u8[16384]{0}', space=vmem, size = 0x4000, scoped, tag = 'output window, operand 0, single buffered']
    %6 = vsyncpa [#allocation3], 0
    %7 = vsyncpa [#allocation4], 0
    // Predicated region
    $region2: #{tpu_custom_call.1} parent=1 // pred_check
      _
    $region3: #{tpu_custom_call.1} parent=1 // pred_check_branch
      %9 = sbr.rel (0) target = $region5
    $region4: #{tpu_custom_call.1} parent=1 // pred_region
      %s11 = ssub.s32 512, 512
      %12 = vsyncadd [#allocation3], %s11
      %s14 = sshll.u32 [#allocation2], 4
      %s15 = int_to_ptr.vmem [resolvable:$true] %s14
      %17 = dma.hbm_to_vmem [thread:$0]  %s0, 512, %s15, [#allocation3]
    $region5: #{tpu_custom_call.1} parent=1 // pred_fallthru
      _
    // Predicated region
    $region6: #{tpu_custom_call.1} parent=1 // pred_check
      _
    $region7: #{tpu_custom_call.1} parent=1 // pred_check_branch
      %19 = sbr.rel (0) target = $region9
    $region8: #{tpu_custom_call.1} parent=1 // pred_region
      %20 = dma.done [#allocation3], 512
    $region9: #{tpu_custom_call.1} parent=1 // pred_fallthru
      _
    %v21 = vld [vmem:[#allocation2] sm:$0xff]
    %v22 = vld [vmem:[#allocation2 + $0x8] sm:$0xff]
    %v23 = vld [vmem:[#allocation2 + $0x10] sm:$0xff]
    %v24 = vld [vmem:[#allocation2 + $0x18] sm:$0xff]
    %v25 = vadd.f32 %v21, 1.0
    %v26 = vadd.f32 %v22, 1.0
    %v27 = vadd.f32 %v23, 1.0
    %v28 = vadd.f32 %v24, 1.0
    %29 = vst [vmem:[#allocation5] sm:$0xff] %v25
    %30 = vst [vmem:[#allocation5 + $0x8] sm:$0xff] %v26
    %31 = vst [vmem:[#allocation5 + $0x10] sm:$0xff] %v27
    %32 = vst [vmem:[#allocation5 + $0x18] sm:$0xff] %v28
    // Predicated region
    $region10: #{tpu_custom_call.1} parent=1 // pred_check
      _
    $region11: #{tpu_custom_call.1} parent=1 // pred_check_branch
      %34 = sbr.rel (0) target = $region13
    $region12: #{tpu_custom_call.1} parent=1 // pred_region
      %s36 = ssub.s32 512, 512
      %37 = vsyncadd [#allocation4], %s36
      %s39 = sshll.u32 [#allocation5], 4
      %s40 = int_to_ptr.vmem [resolvable:$true] %s39
      %42 = dma.vmem_to_hbm [thread:$0]  %s40, 512, %s1, [#allocation4]
    $region13: #{tpu_custom_call.1} parent=1 // pred_fallthru
      _
    // Predicated region
    $region14: #{tpu_custom_call.1} parent=1 // pred_check
      _
    $region15: #{tpu_custom_call.1} parent=1 // pred_check_branch
      %44 = sbr.rel (0) target = $region17
    $region16: #{tpu_custom_call.1} parent=1 // pred_region
      %45 = dma.done [#allocation4], 512
    $region17: #{tpu_custom_call.1} parent=1 // pred_fallthru
      _
    %46 = vsyncpa [#allocation3], 1
    %47 = vsyncpa [#allocation4], 1

</llo_original>
